<compile_context>
chip_gen: v6e
topology: v6e:2x2x1
jax: 0.10.0
libtpu: 0.0.40
codegen_flags: <defaults>
</compile_context>

<pallas_src>
import functools

import jax
import jax.numpy as jnp
import numpy as np
from jax.experimental import pallas as pl
from jax.experimental.pallas import tpu as pltpu


def dann_loss_kernel(fs_ref, ft_ref, ws_ref, wt_ref, w1_ref, b1_ref, w2r_ref,
                     b2_ref, out_ref, *, n_rows):
    """One (TM, F) row-tile of source + target features per grid step.

    Accumulates   sum_i w_s[i] * (-log d_s[i])  +  sum_j w_t[j] * (-log(1 - d_t[j]))
    into the SMEM scalar output; finalizes (* 0.5 / N) on the last tile.
    """
    i = pl.program_id(0)

    @pl.when(i == 0)
    def _init():
        out_ref[0, 0] = jnp.float32(0.0)

    b1 = b1_ref[...]                      # (1, H)  f32
    w2_row = w2r_ref[...]                 # (1, H)  f32  (second-layer weight as a lane-dense row)
    b2 = b2_ref[0, 0]                     # scalar  f32  (SMEM)

    # ---- layer 1: MXU matmul (inputs may be bf16), f32 accumulation, ReLU ----
    h_s = jnp.maximum(
        jnp.dot(fs_ref[...], w1_ref[...], preferred_element_type=jnp.float32) + b1, 0.0)
    h_t = jnp.maximum(
        jnp.dot(ft_ref[...], w1_ref[...], preferred_element_type=jnp.float32) + b1, 0.0)

    # ---- layer 2 (output width 1): VPU multiply + XLU lane reduction instead of MXU ----
    logit_s = jnp.sum(h_s * w2_row, axis=-1, keepdims=True) + b2      # (TM, 1)
    logit_t = jnp.sum(h_t * w2_row, axis=-1, keepdims=True) + b2      # (TM, 1)

    # BCE from logits:  -log(sigmoid(x)) = softplus(-x),  -log(1 - sigmoid(x)) = softplus(x)
    # (stable form; torch clamps log at -100, i.e. the per-element NLL term at +100)
    def softplus(x):
        return jnp.maximum(x, 0.0) + jnp.log(1.0 + jnp.exp(-jnp.abs(x)))

    nll_s = jnp.minimum(softplus(-logit_s), 100.0)    # -log(d_s),      source label = 1
    nll_t = jnp.minimum(softplus(logit_t), 100.0)     # -log(1 - d_t),  target label = 0

    tile_sum = jnp.sum(ws_ref[...] * nll_s) + jnp.sum(wt_ref[...] * nll_t)
    out_ref[0, 0] = out_ref[0, 0] + tile_sum

    @pl.when(i == pl.num_programs(0) - 1)
    def _finalize():
        # 0.5 * (sum_s / N + sum_t / N)  ==  (sum_s + sum_t) * 0.5 / N   (N = per-domain batch)
        out_ref[0, 0] = out_ref[0, 0] * jnp.float32(0.5 / n_rows)


def domain_adversarial_loss(f_s, f_t, w1, b1, w2, b2, w_s=None, w_t=None,
                            *, tile_m=256, use_bf16_matmul=False):
    """DANN loss forward. f_s, f_t: (N, F); discriminator = Linear(F,H) + ReLU + Linear(H,1) + Sigmoid."""
    n, feat = f_s.shape
    n_t, feat_t = f_t.shape
    assert n == n_t and feat == feat_t, "chunk(2) semantics assume equal source/target batches"
    hidden = w1.shape[-1]

    # ---- parameter / weight plumbing (tiny, traced once) ----
    compute_dtype = jnp.bfloat16 if use_bf16_matmul else jnp.float32
    f_s = f_s.astype(compute_dtype)
    f_t = f_t.astype(compute_dtype)
    w1 = jnp.asarray(w1).reshape(feat, hidden).astype(compute_dtype)
    b1_row = jnp.asarray(b1, jnp.float32).reshape(1, hidden)
    w2_row = jnp.asarray(w2, jnp.float32).reshape(1, hidden)      # (H, 1) -> lane-dense row
    b2_s = jnp.asarray(b2, jnp.float32).reshape(1, 1)

    def as_col(w):
        return (jnp.ones((n, 1), jnp.float32) if w is None
                else jnp.asarray(w, jnp.float32).reshape(n, 1))
    w_s = as_col(w_s)
    w_t = as_col(w_t)

    # ---- row tiling: TM = N for small batches (single block, any N), otherwise a
    #      multiple-of-8 tile with zero-weight padding on the remainder rows ----
    if n <= tile_m:
        tm, n_pad = n, n
    else:
        tm = max(8, (tile_m // 8) * 8)
        n_pad = pl.cdiv(n, tm) * tm
        if n_pad != n:
            pad = n_pad - n
            f_s = jnp.pad(f_s, ((0, pad), (0, 0)))
            f_t = jnp.pad(f_t, ((0, pad), (0, 0)))
            w_s = jnp.pad(w_s, ((0, pad), (0, 0)))   # zero weight => padded rows contribute 0
            w_t = jnp.pad(w_t, ((0, pad), (0, 0)))
    num_tiles = n_pad // tm

    # TODO(synk): on v7x, shard the row axis across the 2 TensorCores by emitting per-tile
    # partial sums with dimension_semantics=("parallel",) and reducing in the wrapper; kept
    # "arbitrary" + SMEM scalar accumulator here for portability across v5e/v6e/v7x.
    out = pl.pallas_call(
        functools.partial(dann_loss_kernel, n_rows=n),
        out_shape=jax.ShapeDtypeStruct((1, 1), jnp.float32),
        grid=(num_tiles,),
        in_specs=[
            pl.BlockSpec((tm, feat), lambda i: (i, 0)),       # f_s row tile
            pl.BlockSpec((tm, feat), lambda i: (i, 0)),       # f_t row tile
            pl.BlockSpec((tm, 1), lambda i: (i, 0)),          # w_s row tile
            pl.BlockSpec((tm, 1), lambda i: (i, 0)),          # w_t row tile
            pl.BlockSpec((feat, hidden), lambda i: (0, 0)),   # w1 (resident across tiles)
            pl.BlockSpec((1, hidden), lambda i: (0, 0)),      # b1 (resident)
            pl.BlockSpec((1, hidden), lambda i: (0, 0)),      # w2 row (resident)
            pl.BlockSpec(memory_space=pltpu.MemorySpace.SMEM),  # b2 scalar
        ],
        out_specs=pl.BlockSpec(memory_space=pltpu.MemorySpace.SMEM),  # scalar loss accumulator
        compiler_params=pltpu.CompilerParams(dimension_semantics=("arbitrary",)),
    )(f_s, f_t, w_s, w_t, w1, b1_row, w2_row, b2_s)
    return out[0, 0]


def reference_loss(f_s, f_t, w1, b1, w2, b2, w_s=None, w_t=None):
    """Pure-JAX reference mirroring the PyTorch module (explicit sigmoid + clamped log)."""
    n = f_s.shape[0]
    f = jnp.concatenate([f_s, f_t], axis=0).astype(jnp.float32)
    h = jnp.maximum(f @ w1 + b1, 0.0)
    d = jax.nn.sigmoid(h @ w2 + b2)
    d_s, d_t = d[:n], d[n:]
    if w_s is None:
        w_s = jnp.ones((n, 1), jnp.float32)
    if w_t is None:
        w_t = jnp.ones((n, 1), jnp.float32)
    loss_s = jnp.mean(-w_s * jnp.maximum(jnp.log(d_s), -100.0))
    loss_t = jnp.mean(-w_t * jnp.maximum(jnp.log(1.0 - d_t), -100.0))
    return 0.5 * (loss_s + loss_t)


if __name__ == "__main__":
    # Small shapes: N=16 per domain, F=32 features, H=32 discriminator hidden units.
    N, F, H = 16, 32, 32
    key = jax.random.PRNGKey(0)
    k1, k2, k3, k4, k5, k6 = jax.random.split(key, 6)

    f_s = jax.random.normal(k1, (N, F), jnp.float32)
    f_t = jax.random.normal(k2, (N, F), jnp.float32)

    # Deterministic discriminator parameters (Linear(F,H) -> ReLU -> Linear(H,1) -> Sigmoid).
    w1 = jax.random.normal(k3, (F, H), jnp.float32) * 0.1
    b1 = jnp.zeros((H,), jnp.float32)
    w2 = jax.random.normal(k4, (H, 1), jnp.float32) * 0.1
    b2 = jnp.zeros((1,), jnp.float32)

    # Optional per-instance rescaling weights.
    w_s = jnp.abs(jax.random.normal(k5, (N,), jnp.float32))
    w_t = jnp.abs(jax.random.normal(k6, (N,), jnp.float32))

    ref_w = reference_loss(f_s, f_t, w1, b1.reshape(1, H), w2, b2.reshape(1, 1),
                           w_s.reshape(N, 1), w_t.reshape(N, 1))
    ref_unw = reference_loss(f_s, f_t, w1, b1.reshape(1, H), w2, b2.reshape(1, 1))

    # f32 path, tile_m=8 -> grid of 2 row tiles per domain (exercises the SMEM accumulator).
    loss = jax.block_until_ready(
        domain_adversarial_loss(f_s, f_t, w1, b1, w2, b2, w_s, w_t, tile_m=8))
    np.testing.assert_allclose(np.asarray(loss), np.asarray(ref_w), rtol=1e-5, atol=1e-5)

    # Default-weight path (w_s = w_t = None), single block (tm == N).
    loss_unw = jax.block_until_ready(domain_adversarial_loss(f_s, f_t, w1, b1, w2, b2))
    np.testing.assert_allclose(np.asarray(loss_unw), np.asarray(ref_unw), rtol=1e-5, atol=1e-5)

    # bf16 MXU-input path (v6e/v7x HBM-bandwidth optimization) -> looser tolerance.
    loss_bf16 = jax.block_until_ready(
        domain_adversarial_loss(f_s, f_t, w1, b1, w2, b2, w_s, w_t,
                                tile_m=8, use_bf16_matmul=True))
    np.testing.assert_allclose(np.asarray(loss_bf16), np.asarray(ref_w), rtol=2e-2, atol=2e-2)

    print("KERNEL_OK")
</pallas_src>

<mosaic_0001>
module attributes {stable_mosaic.version = 11 : i64} {
  func.func @dann_loss_kernel(%arg0: i32, %arg1: memref<8x32xf32, #tpu.memory_space<vmem>>, %arg2: memref<8x32xf32, #tpu.memory_space<vmem>>, %arg3: memref<8x1xf32, #tpu.memory_space<vmem>>, %arg4: memref<8x1xf32, #tpu.memory_space<vmem>>, %arg5: memref<32x32xf32, #tpu.memory_space<vmem>>, %arg6: memref<1x32xf32, #tpu.memory_space<vmem>>, %arg7: memref<1x32xf32, #tpu.memory_space<vmem>>, %arg8: memref<1x1xf32, #tpu.memory_space<smem>>, %arg9: memref<1x1xf32, #tpu.memory_space<smem>>) attributes {dimension_semantics = [#tpu.dimension_semantics<arbitrary>], iteration_bounds = array<i64: 2>, scalar_prefetch = 0 : i64, scratch_operands = 0 : i64, tpu.core_type = #tpu.core_type<tc>, window_params = [{transform_indices = @transform_0, window_bounds = array<i64: 8, 32>}, {transform_indices = @transform_1, window_bounds = array<i64: 8, 32>}, {transform_indices = @transform_2, window_bounds = array<i64: 8, 1>}, {transform_indices = @transform_3, window_bounds = array<i64: 8, 1>}, {pipeline_mode = #tpu.pipeline_mode<synchronous>, transform_indices = @transform_4, window_bounds = array<i64: 32, 32>}, {pipeline_mode = #tpu.pipeline_mode<synchronous>, transform_indices = @transform_5, window_bounds = array<i64: 1, 32>}, {pipeline_mode = #tpu.pipeline_mode<synchronous>, transform_indices = @transform_6, window_bounds = array<i64: 1, 32>}, {transform_indices = @transform_7, window_bounds = array<i64: 1, 1>}, {transform_indices = @transform_8, window_bounds = array<i64: 1, 1>}]} {
    %c0_i32 = arith.constant 0 : i32
    %0 = arith.cmpi eq, %arg0, %c0_i32 : i32
    %1 = arith.extui %0 : i1 to i32
    %c0_i32_0 = arith.constant 0 : i32
    %2 = arith.cmpi ne, %1, %c0_i32_0 : i32
    scf.if %2 {
      %cst_39 = arith.constant 0.000000e+00 : f32
      %c0_40 = arith.constant 0 : index
      %c0_41 = arith.constant 0 : index
      %77 = memref.load %arg9[%c0_40, %c0_41] : memref<1x1xf32, #tpu.memory_space<smem>>
      memref.store %cst_39, %arg9[%c0_40, %c0_41] : memref<1x1xf32, #tpu.memory_space<smem>>
    } else {
    }
    %c0 = arith.constant 0 : index
    %c0_1 = arith.constant 0 : index
    %3 = vector.load %arg6[%c0, %c0_1] : memref<1x32xf32, #tpu.memory_space<vmem>>, vector<1x32xf32>
    %c0_2 = arith.constant 0 : index
    %c0_3 = arith.constant 0 : index
    %4 = vector.load %arg7[%c0_2, %c0_3] : memref<1x32xf32, #tpu.memory_space<vmem>>, vector<1x32xf32>
    %c0_4 = arith.constant 0 : index
    %c0_5 = arith.constant 0 : index
    %5 = memref.load %arg8[%c0_4, %c0_5] : memref<1x1xf32, #tpu.memory_space<smem>>
    %c0_6 = arith.constant 0 : index
    %c0_7 = arith.constant 0 : index
    %6 = vector.load %arg1[%c0_6, %c0_7] : memref<8x32xf32, #tpu.memory_space<vmem>>, vector<8x32xf32>
    %c0_8 = arith.constant 0 : index
    %c0_9 = arith.constant 0 : index
    %7 = vector.load %arg5[%c0_8, %c0_9] : memref<32x32xf32, #tpu.memory_space<vmem>>, vector<32x32xf32>
    %cst = arith.constant dense<0.000000e+00> : vector<8x32xf32>
    %8 = tpu.matmul %6, %7, %cst {dimension_numbers = #tpu.dot_dimension_numbers<[1], [0], [0], [1], [0, 0, 1, 1], [], []>} : vector<8x32xf32>, vector<32x32xf32>, vector<8x32xf32> -> vector<8x32xf32>
    %9 = vector.broadcast %3 : vector<1x32xf32> to vector<8x32xf32>
    %10 = arith.addf %8, %9 : vector<8x32xf32>
    %cst_10 = arith.constant 0.000000e+00 : f32
    %11 = vector.broadcast %cst_10 : f32 to vector<8x32xf32>
    %12 = arith.maximumf %10, %11 : vector<8x32xf32>
    %c0_11 = arith.constant 0 : index
    %c0_12 = arith.constant 0 : index
    %13 = vector.load %arg2[%c0_11, %c0_12] : memref<8x32xf32, #tpu.memory_space<vmem>>, vector<8x32xf32>
    %c0_13 = arith.constant 0 : index
    %c0_14 = arith.constant 0 : index
    %14 = vector.load %arg5[%c0_13, %c0_14] : memref<32x32xf32, #tpu.memory_space<vmem>>, vector<32x32xf32>
    %cst_15 = arith.constant dense<0.000000e+00> : vector<8x32xf32>
    %15 = tpu.matmul %13, %14, %cst_15 {dimension_numbers = #tpu.dot_dimension_numbers<[1], [0], [0], [1], [0, 0, 1, 1], [], []>} : vector<8x32xf32>, vector<32x32xf32>, vector<8x32xf32> -> vector<8x32xf32>
    %16 = vector.broadcast %3 : vector<1x32xf32> to vector<8x32xf32>
    %17 = arith.addf %15, %16 : vector<8x32xf32>
    %cst_16 = arith.constant 0.000000e+00 : f32
    %18 = vector.broadcast %cst_16 : f32 to vector<8x32xf32>
    %19 = arith.maximumf %17, %18 : vector<8x32xf32>
    %20 = vector.broadcast %4 : vector<1x32xf32> to vector<8x32xf32>
    %21 = arith.mulf %12, %20 : vector<8x32xf32>
    %cst_17 = arith.constant dense<0.000000e+00> : vector<8xf32>
    %22 = vector.multi_reduction <add>, %21, %cst_17 [1] : vector<8x32xf32> to vector<8xf32>
    %23 = vector.shape_cast %22 : vector<8xf32> to vector<8x1xf32>
    %24 = vector.broadcast %5 : f32 to vector<8x1xf32>
    %25 = arith.addf %23, %24 : vector<8x1xf32>
    %26 = vector.broadcast %4 : vector<1x32xf32> to vector<8x32xf32>
    %27 = arith.mulf %19, %26 : vector<8x32xf32>
    %cst_18 = arith.constant dense<0.000000e+00> : vector<8xf32>
    %28 = vector.multi_reduction <add>, %27, %cst_18 [1] : vector<8x32xf32> to vector<8xf32>
    %29 = vector.shape_cast %28 : vector<8xf32> to vector<8x1xf32>
    %30 = vector.broadcast %5 : f32 to vector<8x1xf32>
    %31 = arith.addf %29, %30 : vector<8x1xf32>
    %cst_19 = arith.constant 0.000000e+00 : f32
    %32 = vector.broadcast %cst_19 : f32 to vector<8x1xf32>
    %33 = arith.subf %32, %25 : vector<8x1xf32>
    %cst_20 = arith.constant 0.000000e+00 : f32
    %34 = vector.broadcast %cst_20 : f32 to vector<8x1xf32>
    %35 = arith.maximumf %33, %34 : vector<8x1xf32>
    %36 = math.absf %33 : vector<8x1xf32>
    %cst_21 = arith.constant 0.000000e+00 : f32
    %37 = vector.broadcast %cst_21 : f32 to vector<8x1xf32>
    %38 = arith.subf %37, %36 : vector<8x1xf32>
    %39 = math.exp %38 : vector<8x1xf32>
    %cst_22 = arith.constant 1.000000e+00 : f32
    %40 = vector.broadcast %cst_22 : f32 to vector<8x1xf32>
    %41 = arith.addf %40, %39 : vector<8x1xf32>
    %42 = math.log %41 : vector<8x1xf32>
    %43 = arith.addf %35, %42 : vector<8x1xf32>
    %cst_23 = arith.constant 1.000000e+02 : f32
    %44 = vector.broadcast %cst_23 : f32 to vector<8x1xf32>
    %45 = arith.minimumf %43, %44 : vector<8x1xf32>
    %cst_24 = arith.constant 0.000000e+00 : f32
    %46 = vector.broadcast %cst_24 : f32 to vector<8x1xf32>
    %47 = arith.maximumf %31, %46 : vector<8x1xf32>
    %48 = math.absf %31 : vector<8x1xf32>
    %cst_25 = arith.constant 0.000000e+00 : f32
    %49 = vector.broadcast %cst_25 : f32 to vector<8x1xf32>
    %50 = arith.subf %49, %48 : vector<8x1xf32>
    %51 = math.exp %50 : vector<8x1xf32>
    %cst_26 = arith.constant 1.000000e+00 : f32
    %52 = vector.broadcast %cst_26 : f32 to vector<8x1xf32>
    %53 = arith.addf %52, %51 : vector<8x1xf32>
    %54 = math.log %53 : vector<8x1xf32>
    %55 = arith.addf %47, %54 : vector<8x1xf32>
    %cst_27 = arith.constant 1.000000e+02 : f32
    %56 = vector.broadcast %cst_27 : f32 to vector<8x1xf32>
    %57 = arith.minimumf %55, %56 : vector<8x1xf32>
    %c0_28 = arith.constant 0 : index
    %c0_29 = arith.constant 0 : index
    %58 = vector.load %arg3[%c0_28, %c0_29] : memref<8x1xf32, #tpu.memory_space<vmem>>, vector<8x1xf32>
    %59 = arith.mulf %58, %45 : vector<8x1xf32>
    %60 = vector.shape_cast %59 : vector<8x1xf32> to vector<1x8x1xf32>
    %cst_30 = arith.constant dense<0.000000e+00> : vector<1xf32>
    %61 = vector.multi_reduction <add>, %60, %cst_30 [1, 2] : vector<1x8x1xf32> to vector<1xf32>
    %62 = vector.shape_cast %61 : vector<1xf32> to vector<1x1x1xf32>
    %63 = vector.extract %62[0, 0, 0] : f32 from vector<1x1x1xf32>
    %c0_31 = arith.constant 0 : index
    %c0_32 = arith.constant 0 : index
    %64 = vector.load %arg4[%c0_31, %c0_32] : memref<8x1xf32, #tpu.memory_space<vmem>>, vector<8x1xf32>
    %65 = arith.mulf %64, %57 : vector<8x1xf32>
    %66 = vector.shape_cast %65 : vector<8x1xf32> to vector<1x8x1xf32>
    %cst_33 = arith.constant dense<0.000000e+00> : vector<1xf32>
    %67 = vector.multi_reduction <add>, %66, %cst_33 [1, 2] : vector<1x8x1xf32> to vector<1xf32>
    %68 = vector.shape_cast %67 : vector<1xf32> to vector<1x1x1xf32>
    %69 = vector.extract %68[0, 0, 0] : f32 from vector<1x1x1xf32>
    %70 = arith.addf %63, %69 : f32
    %c0_34 = arith.constant 0 : index
    %c0_35 = arith.constant 0 : index
    %71 = memref.load %arg9[%c0_34, %c0_35] : memref<1x1xf32, #tpu.memory_space<smem>>
    %72 = arith.addf %71, %70 : f32
    %c0_36 = arith.constant 0 : index
    %c0_37 = arith.constant 0 : index
    %73 = memref.load %arg9[%c0_36, %c0_37] : memref<1x1xf32, #tpu.memory_space<smem>>
    memref.store %72, %arg9[%c0_36, %c0_37] : memref<1x1xf32, #tpu.memory_space<smem>>
    %c1_i32 = arith.constant 1 : i32
    %74 = arith.cmpi eq, %arg0, %c1_i32 : i32
    %75 = arith.extui %74 : i1 to i32
    %c0_i32_38 = arith.constant 0 : i32
    %76 = arith.cmpi ne, %75, %c0_i32_38 : i32
    scf.if %76 {
      %c0_39 = arith.constant 0 : index
      %c0_40 = arith.constant 0 : index
      %77 = memref.load %arg9[%c0_39, %c0_40] : memref<1x1xf32, #tpu.memory_space<smem>>
      %cst_41 = arith.constant 3.125000e-02 : f32
      %78 = arith.mulf %77, %cst_41 : f32
      %c0_42 = arith.constant 0 : index
      %c0_43 = arith.constant 0 : index
      %79 = memref.load %arg9[%c0_42, %c0_43] : memref<1x1xf32, #tpu.memory_space<smem>>
      memref.store %78, %arg9[%c0_42, %c0_43] : memref<1x1xf32, #tpu.memory_space<smem>>
    } else {
    }
    return
  }
  func.func @transform_0(%arg0: i32) -> (i32, i32) {
    %c0_i32 = arith.constant 0 : i32
    %c0_i32_0 = arith.constant 0 : i32
    return %arg0, %c0_i32 : i32, i32
  }
  func.func @transform_1(%arg0: i32) -> (i32, i32) {
    %c0_i32 = arith.constant 0 : i32
    %c0_i32_0 = arith.constant 0 : i32
    return %arg0, %c0_i32 : i32, i32
  }
  func.func @transform_2(%arg0: i32) -> (i32, i32) {
    %c0_i32 = arith.constant 0 : i32
    %c0_i32_0 = arith.constant 0 : i32
    return %arg0, %c0_i32 : i32, i32
  }
  func.func @transform_3(%arg0: i32) -> (i32, i32) {
    %c0_i32 = arith.constant 0 : i32
    %c0_i32_0 = arith.constant 0 : i32
    return %arg0, %c0_i32 : i32, i32
  }
  func.func @transform_4(%arg0: i32) -> (i32, i32) {
    %c0_i32 = arith.constant 0 : i32
    %c0_i32_0 = arith.constant 0 : i32
    %c0_i32_1 = arith.constant 0 : i32
    return %c0_i32, %c0_i32_0 : i32, i32
  }
  func.func @transform_5(%arg0: i32) -> (i32, i32) {
    %c0_i32 = arith.constant 0 : i32
    %c0_i32_0 = arith.constant 0 : i32
    %c0_i32_1 = arith.constant 0 : i32
    return %c0_i32, %c0_i32_0 : i32, i32
  }
  func.func @transform_6(%arg0: i32) -> (i32, i32) {
    %c0_i32 = arith.constant 0 : i32
    %c0_i32_0 = arith.constant 0 : i32
    %c0_i32_1 = arith.constant 0 : i32
    return %c0_i32, %c0_i32_0 : i32, i32
  }
  func.func @transform_7(%arg0: i32) -> (i32, i32) {
    %c0_i32 = arith.constant 0 : i32
    %c0_i32_0 = arith.constant 0 : i32
    %c0_i32_1 = arith.constant 0 : i32
    return %c0_i32, %c0_i32_0 : i32, i32
  }
  func.func @transform_8(%arg0: i32) -> (i32, i32) {
    %c0_i32 = arith.constant 0 : i32
    %c0_i32_0 = arith.constant 0 : i32
    %c0_i32_1 = arith.constant 0 : i32
    return %c0_i32, %c0_i32_0 : i32, i32
  }
}

</mosaic_0001>

<llo_original>
// kernel: tpu_custom_call.1
$region0: #{tpu_custom_call.1}
  #allocation0 [shape = 'u32[]', space=smem, size = 0x4, offset = 0x4, fixed_abs, tag = 'smem constant byte address 0x4 - core index']
  #allocation1 [shape = 'u32[144,128]{1,0:T(1,128)}', space=vmem, size = 0x12000, scoped, tag = 'internal scratch']
  #allocation2 [shape = 'f32[1,1]{1,0:T(1,128)S(6)}', space=smem, size = 0x200, scoped, tag = 'scoped memory for tpu_custom_call.1']
  %s0 = inlined_call_operand.hbm [shape: f32[16,32], index: 0, kind: input, shape index: {}]
  %s1 = inlined_call_operand.hbm [shape: f32[16,32], index: 1, kind: input, shape index: {}]
  %s2 = inlined_call_operand.vmem [shape: f32[16,1], index: 2, kind: input, shape index: {}]
  %s3 = inlined_call_operand.vmem [shape: f32[16,1], index: 3, kind: input, shape index: {}]
  %s4 = inlined_call_operand.vmem [shape: f32[32,32], index: 4, kind: input, shape index: {}]
  %s5 = inlined_call_operand.vmem [shape: f32[1,32], index: 5, kind: input, shape index: {}]
  %s6 = inlined_call_operand.vmem [shape: f32[1,32], index: 6, kind: input, shape index: {}]
  %s7 = inlined_call_operand.<no memory space> [shape: f32[1,1], index: 7, kind: input, shape index: {}]
  %s8 = inlined_call_operand.hbm [shape: f32[1,1], index: 8, kind: output, shape index: {}]
  %s9 = sld [smem:[#allocation0]]
  $region81: #{tpu_custom_call.1} parent=0
    _
  %s11 = ssub.s32 1, %s9
  %s12 = scalar_select 0, %s11, %s9
  %13 = sst [smem:[#allocation2]] %s7
  $region1: #{tpu_custom_call.1} parent=0
    #allocation3 [shape = 'u8[8192]{0}', space=vmem, size = 0x2000, scoped, tag = 'input window, operand 0']
    #allocation4 [shape = 's32[2]{0}', space=sflag, size = 0x8, scoped, tag = 'scoped memory for tpu_custom_call.1']
    #allocation5 [shape = 's32[2]{0}', space=sflag, size = 0x8, scoped, tag = 'scoped memory for tpu_custom_call.1']
    #allocation6 [shape = 'u8[8192]{0}', space=vmem, size = 0x2000, scoped, tag = 'input window, operand 1']
    #allocation7 [shape = 's32[2]{0}', space=sflag, size = 0x8, scoped, tag = 'scoped memory for tpu_custom_call.1']
    #allocation8 [shape = 'u8[512]{0}', space=smem, size = 0x200, scoped, tag = 'output window, operand 0, single buffered']
    %14 = vsyncpa [#allocation4], 0
    %s15 = scalar_lea.sflag [#allocation4], 1
    %16 = vsyncpa %s15, 0
    %17 = vsyncpa [#allocation7], 0
    %s18 = scalar_lea.sflag [#allocation7], 1
    %19 = vsyncpa %s18, 0
    %20 = vsyncpa [#allocation5], 0
    loop: start=0, step=1, limit=4
    $region2: #{tpu_custom_call.1} parent=1 // loop_pre_header
      _
    $region3: #{tpu_custom_call.1} parent=1 // loop_header
      %s22 = sphi 0, %s26
      %p23 = scmp.ge.s32.totalorder %s22, 4
      %s32 = sphi 0, %s34
      %s35 = sphi 0, %s32
      %s36 = sphi 0, %s35
      %s52 = sphi 0, %s36
      %s58 = sphi 0, %s60
      %s61 = sphi 0, %s58
      %s62 = sphi 0, %s61
      %s78 = sphi 0, %s62
      %s84 = sphi 0, %s86
      %s87 = sphi 0, %s84
      %s88 = sphi 0, %s87
      %s104 = sphi 0, %s88
      %s110 = sphi 0, %s112
      %s113 = sphi 0, %s110
      %s114 = sphi 0, %s113
      %s130 = sphi 0, %s114
      %s134 = sphi 0, %s134
      %s136 = sphi 0, %s134
      %s137 = sphi 0, %s136
      %s151 = sphi 0, %s137
      %s155 = sphi 0, %s155
      %s157 = sphi 0, %s155
      %s158 = sphi 0, %s157
      %s172 = sphi 0, %s158
      %s176 = sphi 0, %s176
      %s178 = sphi 0, %s176
      %s179 = sphi 0, %s178
      %s193 = sphi 0, %s179
      %s197 = sphi 0, %s197
      %s199 = sphi 0, %s197
      %s200 = sphi 0, %s199
      %s214 = sphi 0, %s200
      %s218 = sphi 0, %s218
      %s220 = sphi 0, %s218
      %s221 = sphi 0, %s220
      %s235 = sphi 0, %s221
    $region4: #{tpu_custom_call.1} parent=1 // loop_header_branch
      %25 = sbr.rel (%p23) target = $region8
    $region5: #{tpu_custom_call.1} parent=1 // loop_body
      %s27 = ssub.s32 %s22, 1
      %s28 = ssub.s32 %s22, 2
      %s29 = sadd.s32 %s22, 1
      %s30 = ssub.s32 %s22, %s29
      %p31 = scmp.eq.s32.totalorder %s30, 0
      %s33 = sadd.s32 %s32, 1
      %s34 = scalar_select %p31, %s32, %s33
      %p37 = pneg %p31
      %p38 = scmp.eq.s32.totalorder %s22, 1
      %p39 = por %p37, %p38
      %p40 = scmp.ne.s32.totalorder %s32, %s35
      %p41 = scmp.eq.s32.totalorder %s22, 0
      %p42 = por %p40, %p41
      %p43 = scmp.ne.s32.totalorder %s32, %s35
      %p44 = scmp.eq.s32.totalorder %s27, 1
      %p45 = por %p43, %p44
      %p46 = scmp.ne.s32.totalorder %s35, %s36
      %p47 = scmp.eq.s32.totalorder %s27, 0
      %p48 = por %p46, %p47
      %p49 = scmp.ne.s32.totalorder %s35, %s36
      %p50 = scmp.eq.s32.totalorder %s28, 1
      %p51 = por %p49, %p50
      %p53 = scmp.ne.s32.totalorder %s36, %s52
      %p54 = scmp.eq.s32.totalorder %s28, 0
      %p55 = por %p53, %p54
      %s56 = ssub.s32 %s22, %s29
      %p57 = scmp.eq.s32.totalorder %s56, 0
      %s59 = sadd.s32 %s58, 1
      %s60 = scalar_select %p57, %s58, %s59
      %p63 = pneg %p57
      %p64 = scmp.eq.s32.totalorder %s22, 1
      %p65 = por %p63, %p64
      %p66 = scmp.ne.s32.totalorder %s58, %s61
      %p67 = scmp.eq.s32.totalorder %s22, 0
      %p68 = por %p66, %p67
      %p69 = scmp.ne.s32.totalorder %s58, %s61
      %p70 = scmp.eq.s32.totalorder %s27, 1
      %p71 = por %p69, %p70
      %p72 = scmp.ne.s32.totalorder %s61, %s62
      %p73 = scmp.eq.s32.totalorder %s27, 0
      %p74 = por %p72, %p73
      %p75 = scmp.ne.s32.totalorder %s61, %s62
      %p76 = scmp.eq.s32.totalorder %s28, 1
      %p77 = por %p75, %p76
      %p79 = scmp.ne.s32.totalorder %s62, %s78
      %p80 = scmp.eq.s32.totalorder %s28, 0
      %p81 = por %p79, %p80
      %s82 = ssub.s32 %s22, %s29
      %p83 = scmp.eq.s32.totalorder %s82, 0
      %s85 = sadd.s32 %s84, 1
      %s86 = scalar_select %p83, %s84, %s85
      %p89 = pneg %p83
      %p90 = scmp.eq.s32.totalorder %s22, 1
      %p91 = por %p89, %p90
      %p92 = scmp.ne.s32.totalorder %s84, %s87
      %p93 = scmp.eq.s32.totalorder %s22, 0
      %p94 = por %p92, %p93
      %p95 = scmp.ne.s32.totalorder %s84, %s87
      %p96 = scmp.eq.s32.totalorder %s27, 1
      %p97 = por %p95, %p96
      %p98 = scmp.ne.s32.totalorder %s87, %s88
      %p99 = scmp.eq.s32.totalorder %s27, 0
      %p100 = por %p98, %p99
      %p101 = scmp.ne.s32.totalorder %s87, %s88
      %p102 = scmp.eq.s32.totalorder %s28, 1
      %p103 = por %p101, %p102
      %p105 = scmp.ne.s32.totalorder %s88, %s104
      %p106 = scmp.eq.s32.totalorder %s28, 0
      %p107 = por %p105, %p106
      %s108 = ssub.s32 %s22, %s29
      %p109 = scmp.eq.s32.totalorder %s108, 0
      %s111 = sadd.s32 %s110, 1
      %s112 = scalar_select %p109, %s110, %s111
      %p115 = pneg %p109
      %p116 = scmp.eq.s32.totalorder %s22, 1
      %p117 = por %p115, %p116
      %p118 = scmp.ne.s32.totalorder %s110, %s113
      %p119 = scmp.eq.s32.totalorder %s22, 0
      %p120 = por %p118, %p119
      %p121 = scmp.ne.s32.totalorder %s110, %s113
      %p122 = scmp.eq.s32.totalorder %s27, 1
      %p123 = por %p121, %p122
      %p124 = scmp.ne.s32.totalorder %s113, %s114
      %p125 = scmp.eq.s32.totalorder %s27, 0
      %p126 = por %p124, %p125
      %p127 = scmp.ne.s32.totalorder %s113, %s114
      %p128 = scmp.eq.s32.totalorder %s28, 1
      %p129 = por %p127, %p128
      %p131 = scmp.ne.s32.totalorder %s114, %s130
      %p132 = scmp.eq.s32.totalorder %s28, 0
      %p133 = por %p131, %p132
      %s135 = sadd.s32 %s134, 1
      %p138 = scmp.eq.s32.totalorder %s22, 1
      %p139 = scmp.ne.s32.totalorder %s134, %s136
      %p140 = scmp.eq.s32.totalorder %s22, 0
      %p141 = por %p139, %p140
      %p142 = scmp.ne.s32.totalorder %s134, %s136
      %p143 = scmp.eq.s32.totalorder %s27, 1
      %p144 = por %p142, %p143
      %p145 = scmp.ne.s32.totalorder %s136, %s137
      %p146 = scmp.eq.s32.totalorder %s27, 0
      %p147 = por %p145, %p146
      %p148 = scmp.ne.s32.totalorder %s136, %s137
      %p149 = scmp.eq.s32.totalorder %s28, 1
      %p150 = por %p148, %p149
      %p152 = scmp.ne.s32.totalorder %s137, %s151
      %p153 = scmp.eq.s32.totalorder %s28, 0
      %p154 = por %p152, %p153
      %s156 = sadd.s32 %s155, 1
      %p159 = scmp.eq.s32.totalorder %s22, 1
      %p160 = scmp.ne.s32.totalorder %s155, %s157
      %p161 = scmp.eq.s32.totalorder %s22, 0
      %p162 = por %p160, %p161
      %p163 = scmp.ne.s32.totalorder %s155, %s157
      %p164 = scmp.eq.s32.totalorder %s27, 1
      %p165 = por %p163, %p164
      %p166 = scmp.ne.s32.totalorder %s157, %s158
      %p167 = scmp.eq.s32.totalorder %s27, 0
      %p168 = por %p166, %p167
      %p169 = scmp.ne.s32.totalorder %s157, %s158
      %p170 = scmp.eq.s32.totalorder %s28, 1
      %p171 = por %p169, %p170
      %p173 = scmp.ne.s32.totalorder %s158, %s172
      %p174 = scmp.eq.s32.totalorder %s28, 0
      %p175 = por %p173, %p174
      %s177 = sadd.s32 %s176, 1
      %p180 = scmp.eq.s32.totalorder %s22, 1
      %p181 = scmp.ne.s32.totalorder %s176, %s178
      %p182 = scmp.eq.s32.totalorder %s22, 0
      %p183 = por %p181, %p182
      %p184 = scmp.ne.s32.totalorder %s176, %s178
      %p185 = scmp.eq.s32.totalorder %s27, 1
      %p186 = por %p184, %p185
      %p187 = scmp.ne.s32.totalorder %s178, %s179
      %p188 = scmp.eq.s32.totalorder %s27, 0
      %p189 = por %p187, %p188
      %p190 = scmp.ne.s32.totalorder %s178, %s179
      %p191 = scmp.eq.s32.totalorder %s28, 1
      %p192 = por %p190, %p191
      %p194 = scmp.ne.s32.totalorder %s179, %s193
      %p195 = scmp.eq.s32.totalorder %s28, 0
      %p196 = por %p194, %p195
      %s198 = sadd.s32 %s197, 1
      %p201 = scmp.eq.s32.totalorder %s22, 1
      %p202 = scmp.ne.s32.totalorder %s197, %s199
      %p203 = scmp.eq.s32.totalorder %s22, 0
      %p204 = por %p202, %p203
      %p205 = scmp.ne.s32.totalorder %s197, %s199
      %p206 = scmp.eq.s32.totalorder %s27, 1
      %p207 = por %p205, %p206
      %p208 = scmp.ne.s32.totalorder %s199, %s200
      %p209 = scmp.eq.s32.totalorder %s27, 0
      %p210 = por %p208, %p209
      %p211 = scmp.ne.s32.totalorder %s199, %s200
      %p212 = scmp.eq.s32.totalorder %s28, 1
      %p213 = por %p211, %p212
      %p215 = scmp.ne.s32.totalorder %s200, %s214
      %p216 = scmp.eq.s32.totalorder %s28, 0
      %p217 = por %p215, %p216
      %s219 = sadd.s32 %s218, 1
      %p222 = scmp.eq.s32.totalorder %s22, 1
      %p223 = scmp.ne.s32.totalorder %s218, %s220
      %p224 = scmp.eq.s32.totalorder %s22, 0
      %p225 = por %p223, %p224
      %p226 = scmp.ne.s32.totalorder %s218, %s220
      %p227 = scmp.eq.s32.totalorder %s27, 1
      %p228 = por %p226, %p227
      %p229 = scmp.ne.s32.totalorder %s220, %s221
      %p230 = scmp.eq.s32.totalorder %s27, 0
      %p231 = por %p229, %p230
      %p232 = scmp.ne.s32.totalorder %s220, %s221
      %p233 = scmp.eq.s32.totalorder %s28, 1
      %p234 = por %p232, %p233
      %p236 = scmp.ne.s32.totalorder %s221, %s235
      %p237 = scmp.eq.s32.totalorder %s28, 0
      %p238 = por %p236, %p237
      %p239 = scmp.le.s32.totalorder 1, %s22
      %p240 = scmp.lt.s32.totalorder %s22, 3
      %p241 = pnand %p239, %p240
      %p242 = pneg %p241
      // Predicated region
      $region9: #{tpu_custom_call.1} parent=5 // pred_check
        _
      $region10: #{tpu_custom_call.1} parent=5 // pred_check_branch
        %244 = sbr.rel (%p241) target = $region12
      $region11: #{tpu_custom_call.1} parent=5 // pred_region
        %s245 = ssub.s32 %s22, 1
        // Predicated region
        $region13: #{tpu_custom_call.1} parent=11 // pred_check
          %p246 = pneg %p147
        $region14: #{tpu_custom_call.1} parent=11 // pred_check_branch
          %248 = sbr.rel (%p246) target = $region16
        $region15: #{tpu_custom_call.1} parent=11 // pred_region
          _
        $region16: #{tpu_custom_call.1} parent=11 // pred_fallthru
          _
        // Predicated region
        $region17: #{tpu_custom_call.1} parent=11 // pred_check
          %p249 = pneg %p168
        $region18: #{tpu_custom_call.1} parent=11 // pred_check_branch
          %251 = sbr.rel (%p249) target = $region20
        $region19: #{tpu_custom_call.1} parent=11 // pred_region
          _
        $region20: #{tpu_custom_call.1} parent=11 // pred_fallthru
          _
        // Predicated region
        $region21: #{tpu_custom_call.1} parent=11 // pred_check
          %p252 = pneg %p189
        $region22: #{tpu_custom_call.1} parent=11 // pred_check_branch
          %254 = sbr.rel (%p252) target = $region24
        $region23: #{tpu_custom_call.1} parent=11 // pred_region
          _
        $region24: #{tpu_custom_call.1} parent=11 // pred_fallthru
          _
        // Predicated region
        $region25: #{tpu_custom_call.1} parent=11 // pred_check
          %p255 = pneg %p210
        $region26: #{tpu_custom_call.1} parent=11 // pred_check_branch
          %257 = sbr.rel (%p255) target = $region28
        $region27: #{tpu_custom_call.1} parent=11 // pred_region
          _
        $region28: #{tpu_custom_call.1} parent=11 // pred_fallthru
          _
      $region12: #{tpu_custom_call.1} parent=5 // pred_fallthru
        _
      %p258 = scmp.lt.s32.totalorder %s22, 2
      // Predicated region
      $region29: #{tpu_custom_call.1} parent=5 // pred_check
        %p259 = pneg %p258
      $region30: #{tpu_custom_call.1} parent=5 // pred_check_branch
        %261 = sbr.rel (%p259) target = $region32
      $region31: #{tpu_custom_call.1} parent=5 // pred_region
        // Predicated region
        $region33: #{tpu_custom_call.1} parent=31 // pred_check
          %p262 = pneg %p42
        $region34: #{tpu_custom_call.1} parent=31 // pred_check_branch
          %264 = sbr.rel (%p262) target = $region36
        $region35: #{tpu_custom_call.1} parent=31 // pred_region
          %s265 = sand.u32 %s32, 1
          %s266 = scalar_lea.sflag [#allocation4], %s265
          %s267 = sand.u32 %s32, 1
          %s268 = smul.addr %s267, 8
          %s269 = scalar_lea.vmem [#allocation3], %s268
          %s271 = ssub.s32 128, 128
          %272 = vsyncadd %s266, %s271
          %s273 = smul.addr %s22, 128
          %s274 = scalar_lea.hbm %s0, %s273
          %s276 = sshll.u32 %s269, 4
          %s277 = int_to_ptr.vmem [resolvable:$true] %s276
          %279 = dma.hbm_to_vmem [thread:$0]  %s274, 128, %s277, %s266
        $region36: #{tpu_custom_call.1} parent=31 // pred_fallthru
          _
        // Predicated region
        $region37: #{tpu_custom_call.1} parent=31 // pred_check
          %p280 = pneg %p68
        $region38: #{tpu_custom_call.1} parent=31 // pred_check_branch
          %282 = sbr.rel (%p280) target = $region40
        $region39: #{tpu_custom_call.1} parent=31 // pred_region
          %s283 = sand.u32 %s58, 1
          %s284 = scalar_lea.sflag [#allocation7], %s283
          %s285 = sand.u32 %s58, 1
          %s286 = smul.addr %s285, 8
          %s287 = scalar_lea.vmem [#allocation6], %s286
          %s289 = ssub.s32 128, 128
          %290 = vsyncadd %s284, %s289
          %s291 = smul.addr %s22, 128
          %s292 = scalar_lea.hbm %s1, %s291
          %s294 = sshll.u32 %s287, 4
          %s295 = int_to_ptr.vmem [resolvable:$true] %s294
          %297 = dma.hbm_to_vmem [thread:$0]  %s292, 128, %s295, %s284
        $region40: #{tpu_custom_call.1} parent=31 // pred_fallthru
          _
        // Predicated region
        $region41: #{tpu_custom_call.1} parent=31 // pred_check
          %p298 = pneg %p94
        $region42: #{tpu_custom_call.1} parent=31 // pred_check_branch
          %300 = sbr.rel (%p298) target = $region44
        $region43: #{tpu_custom_call.1} parent=31 // pred_region
          %p301 = scmp.lt.s32.totalorder %s22, 1
          %s302 = scalar_select %p301, %s22, 1
          %s303 = smul.addr %s302, 8
          %s304 = scalar_lea.vmem %s2, %s303
        $region44: #{tpu_custom_call.1} parent=31 // pred_fallthru
          _
        // Predicated region
        $region45: #{tpu_custom_call.1} parent=31 // pred_check
          %p305 = pneg %p120
        $region46: #{tpu_custom_call.1} parent=31 // pred_check_branch
          %307 = sbr.rel (%p305) target = $region48
        $region47: #{tpu_custom_call.1} parent=31 // pred_region
          %p308 = scmp.lt.s32.totalorder %s22, 1
          %s309 = scalar_select %p308, %s22, 1
          %s310 = smul.addr %s309, 8
          %s311 = scalar_lea.vmem %s3, %s310
        $region48: #{tpu_custom_call.1} parent=31 // pred_fallthru
          _
      $region32: #{tpu_custom_call.1} parent=5 // pred_fallthru
        _
      %p312 = scmp.le.s32.totalorder 1, %s22
      %p313 = scmp.lt.s32.totalorder %s22, 3
      %p314 = pnand %p312, %p313
      %p315 = pneg %p314
      // Predicated region
      $region49: #{tpu_custom_call.1} parent=5 // pred_check
        _
      $region50: #{tpu_custom_call.1} parent=5 // pred_check_branch
        %317 = sbr.rel (%p314) target = $region52
      $region51: #{tpu_custom_call.1} parent=5 // pred_region
        %s318 = ssub.s32 %s22, 1
        %s319 = sand.u32 %s35, 1
        %s320 = scalar_lea.sflag [#allocation4], %s319
        %s321 = sand.u32 %s35, 1
        %s322 = smul.addr %s321, 8
        %s323 = scalar_lea.vmem [#allocation3], %s322
        // Predicated region
        $region53: #{tpu_custom_call.1} parent=51 // pred_check
          %p324 = pneg %p48
        $region54: #{tpu_custom_call.1} parent=51 // pred_check_branch
          %326 = sbr.rel (%p324) target = $region56
        $region55: #{tpu_custom_call.1} parent=51 // pred_region
          %327 = dma.done %s320, 128
        $region56: #{tpu_custom_call.1} parent=51 // pred_fallthru
          _
        %s328 = sand.u32 %s61, 1
        %s329 = scalar_lea.sflag [#allocation7], %s328
        %s330 = sand.u32 %s61, 1
        %s331 = smul.addr %s330, 8
        %s332 = scalar_lea.vmem [#allocation6], %s331
        // Predicated region
        $region57: #{tpu_custom_call.1} parent=51 // pred_check
          %p333 = pneg %p74
        $region58: #{tpu_custom_call.1} parent=51 // pred_check_branch
          %335 = sbr.rel (%p333) target = $region60
        $region59: #{tpu_custom_call.1} parent=51 // pred_region
          %336 = dma.done %s329, 128
        $region60: #{tpu_custom_call.1} parent=51 // pred_fallthru
          _
        %s337 = sand.u32 %s35, 1
        %s338 = scalar_lea.sflag [#allocation4], %s337
        %s339 = sand.u32 %s35, 1
        %s340 = smul.addr %s339, 8
        %s341 = scalar_lea.vmem [#allocation3], %s340
        %p342 = pneg %p48
        %p343 = pneg %p45
        %s344 = sand.u32 %s61, 1
        %s345 = scalar_lea.sflag [#allocation7], %s344
        %s346 = sand.u32 %s61, 1
        %s347 = smul.addr %s346, 8
        %s348 = scalar_lea.vmem [#allocation6], %s347
        %p349 = pneg %p74
        %p350 = pneg %p71
        %p351 = scmp.lt.s32.totalorder %s27, 1
        %s352 = scalar_select %p351, %s27, 1
        %s353 = smul.addr %s352, 8
        %s354 = scalar_lea.vmem %s2, %s353
        %p355 = pneg %p100
        %p356 = pneg %p97
        %p357 = scmp.lt.s32.totalorder %s27, 1
        %s358 = scalar_select %p357, %s27, 1
        %s359 = smul.addr %s358, 8
        %s360 = scalar_lea.vmem %s3, %s359
        %p361 = pneg %p126
        %p362 = pneg %p123
        %p363 = pneg %p147
        %p364 = pneg %p144
        %p365 = pneg %p168
        %p366 = pneg %p165
        %p367 = pneg %p189
        %p368 = pneg %p186
        %p369 = pneg %p210
        %p370 = pneg %p207
        %p371 = pneg %p231
        %p372 = pneg %p228
        %p373 = scmp.lt.s32.totalorder %s27, 1
        %s374 = scalar_select %p373, %s27, 1
        %s375 = smul.addr %s374, 8
        %s376 = scalar_lea.vmem %s2, %s375
        %p377 = scmp.lt.s32.totalorder %s27, 1
        %s378 = scalar_select %p377, %s27, 1
        %s379 = smul.addr %s378, 8
        %s380 = scalar_lea.vmem %s3, %s379
        %p381 = scmp.eq.s32.totalorder %s27, 0
        // Predicated region
        $region61: #{tpu_custom_call.1} parent=51 // pred_check
          %p382 = pneg %p381
        $region62: #{tpu_custom_call.1} parent=51 // pred_check_branch
          %384 = sbr.rel (%p382) target = $region64
        $region63: #{tpu_custom_call.1} parent=51 // pred_region
          %s385 = scalar_lea.smem [#allocation8], 0
          %386 = sst [smem:[%s385]] 0.0
        $region64: #{tpu_custom_call.1} parent=51 // pred_fallthru
          _
        %v387 = vld [vmem:[%s5] sm:$0x1]
        %v388 = vld [vmem:[%s6] sm:$0x1]
        %s389 = sld [smem:[#allocation2]]
        %v390 = vld [vmem:[%s323] sm:$0xff]
        %v391 = vld [vmem:[%s4] sm:$0xff]
        %v392 = vld [vmem:[%s4 + $0x8] sm:$0xff]
        %v393 = vld [vmem:[%s4 + $0x10] sm:$0xff]
        %v394 = vld [vmem:[%s4 + $0x18] sm:$0xff]
        %v396 = vlaneseq
        %v397 = vshrl.u32 %v396, 7
        %v398 = vsub.s32 0, %v397
        %v399 = vrot.slane %v387, %v398
        %vm401 = vcmask 261120
        %v403 = vsel %vm401, %v390, 0
        %405 = vmatprep.subr.mxu0 0.0
        %406 = vmatpush1.msra.mxu0 0.0
        %407 = vmatprep.subr.mxu0 0.0
        %408 = vmatpush1.msra.mxu0 0.0
        %409 = vmatprep.subr.mxu0 0.0
        %410 = vmatpush1.msra.mxu0 0.0
        %411 = vmatprep.subr.mxu0 0.0
        %412 = vmatpush1.msra.mxu0 0.0
        %413 = vmatprep.subr.mxu0 0.0
        %414 = vmatpush1.msra.mxu0 0.0
        %415 = vmatprep.subr.mxu0 0.0
        %416 = vmatpush1.msra.mxu0 0.0
        %417 = vmatprep.subr.mxu0 0.0
        %418 = vmatpush1.msra.mxu0 0.0
        %419 = vmatprep.subr.mxu0 0.0
        %420 = vmatpush1.msra.mxu0 0.0
        %421 = vmatprep.subr.mxu0 0.0
        %422 = vmatpush1.msra.mxu0 0.0
        %423 = vmatprep.subr.mxu0 0.0
        %424 = vmatpush1.msra.mxu0 0.0
        %425 = vmatprep.subr.mxu0 0.0
        %426 = vmatpush1.msra.mxu0 0.0
        %427 = vmatprep.subr.mxu0 0.0
        %428 = vmatpush1.msra.mxu0 0.0
        %429 = vmatprep.subr.mxu0 0.0
        %430 = vmatpush1.msra.mxu0 %v394
        %431 = vmatprep.subr.mxu0 0.0
        %432 = vmatpush1.msra.mxu0 %v393
        %433 = vmatprep.subr.mxu0 0.0
        %434 = vmatpush1.msra.mxu0 %v392
        %435 = vmatprep.subr.mxu0 0.0
        %436 = vmatpush1.msra.mxu0 %v391
        %437 = vmatprep.subr.mxu0 0.0
        %438 = vmatpush2.msra.mxu0 0.0
        %439 = vmatprep.subr.mxu0 0.0
        %440 = vmatpush2.msra.mxu0 0.0
        %441 = vmatprep.subr.mxu0 0.0
        %442 = vmatpush2.msra.mxu0 0.0
        %443 = vmatprep.subr.mxu0 0.0
        %444 = vmatpush2.msra.mxu0 0.0
        %445 = vmatprep.subr.mxu0 0.0
        %446 = vmatpush2.msra.mxu0 0.0
        %447 = vmatprep.subr.mxu0 0.0
        %448 = vmatpush2.msra.mxu0 0.0
        %449 = vmatprep.subr.mxu0 0.0
        %450 = vmatpush2.msra.mxu0 0.0
        %451 = vmatprep.subr.mxu0 0.0
        %452 = vmatpush2.msra.mxu0 0.0
        %453 = vmatprep.subr.mxu0 0.0
        %454 = vmatpush2.msra.mxu0 0.0
        %455 = vmatprep.subr.mxu0 0.0
        %456 = vmatpush2.msra.mxu0 0.0
        %457 = vmatprep.subr.mxu0 0.0
        %458 = vmatpush2.msra.mxu0 0.0
        %459 = vmatprep.subr.mxu0 0.0
        %460 = vmatpush2.msra.mxu0 0.0
        %461 = vmatprep.subr.mxu0 0.0
        %462 = vmatpush2.msra.mxu0 0.0
        %463 = vmatprep.subr.mxu0 0.0
        %464 = vmatpush2.msra.mxu0 0.0
        %465 = vmatprep.subr.mxu0 0.0
        %466 = vmatpush2.msra.mxu0 0.0
        %467 = vmatprep.subr.mxu0 0.0
        %468 = vmatpush2.msra.mxu0 0.0
        %469 = vmatprep.mubr.f32.mxu0 0.0
        %470 = vmatmul.mubr.f32.gmra.mxu0 %v403
        %v471 = vpop.f32.mrf.mxu0
        %v472 = vadd.f32 %v399, %v471
        %v473 = vpop.f32.mrf.mxu0
        %474 = vdwg.mxu0
        %v475 = vmax.f32 %v472, 0.0
        %v476 = vld [vmem:[%s332] sm:$0xff]
        %v478 = vsel %vm401, %v476, 0
        %480 = vmatprep.subr.mxu0 0.0
        %481 = vmatpush1.msra.mxu0 0.0
        %482 = vmatprep.subr.mxu0 0.0
        %483 = vmatpush1.msra.mxu0 0.0
        %484 = vmatprep.subr.mxu0 0.0
        %485 = vmatpush1.msra.mxu0 0.0
        %486 = vmatprep.subr.mxu0 0.0
        %487 = vmatpush1.msra.mxu0 0.0
        %488 = vmatprep.subr.mxu0 0.0
        %489 = vmatpush1.msra.mxu0 0.0
        %490 = vmatprep.subr.mxu0 0.0
        %491 = vmatpush1.msra.mxu0 0.0
        %492 = vmatprep.subr.mxu0 0.0
        %493 = vmatpush1.msra.mxu0 0.0
        %494 = vmatprep.subr.mxu0 0.0
        %495 = vmatpush1.msra.mxu0 0.0
        %496 = vmatprep.subr.mxu0 0.0
        %497 = vmatpush1.msra.mxu0 0.0
        %498 = vmatprep.subr.mxu0 0.0
        %499 = vmatpush1.msra.mxu0 0.0
        %500 = vmatprep.subr.mxu0 0.0
        %501 = vmatpush1.msra.mxu0 0.0
        %502 = vmatprep.subr.mxu0 0.0
        %503 = vmatpush1.msra.mxu0 0.0
        %504 = vmatprep.subr.mxu0 0.0
        %505 = vmatpush1.msra.mxu0 %v394
        %506 = vmatprep.subr.mxu0 0.0
        %507 = vmatpush1.msra.mxu0 %v393
        %508 = vmatprep.subr.mxu0 0.0
        %509 = vmatpush1.msra.mxu0 %v392
        %510 = vmatprep.subr.mxu0 0.0
        %511 = vmatpush1.msra.mxu0 %v391
        %512 = vmatprep.subr.mxu0 0.0
        %513 = vmatpush2.msra.mxu0 0.0
        %514 = vmatprep.subr.mxu0 0.0
        %515 = vmatpush2.msra.mxu0 0.0
        %516 = vmatprep.subr.mxu0 0.0
        %517 = vmatpush2.msra.mxu0 0.0
        %518 = vmatprep.subr.mxu0 0.0
        %519 = vmatpush2.msra.mxu0 0.0
        %520 = vmatprep.subr.mxu0 0.0
        %521 = vmatpush2.msra.mxu0 0.0
        %522 = vmatprep.subr.mxu0 0.0
        %523 = vmatpush2.msra.mxu0 0.0
        %524 = vmatprep.subr.mxu0 0.0
        %525 = vmatpush2.msra.mxu0 0.0
        %526 = vmatprep.subr.mxu0 0.0
        %527 = vmatpush2.msra.mxu0 0.0
        %528 = vmatprep.subr.mxu0 0.0
        %529 = vmatpush2.msra.mxu0 0.0
        %530 = vmatprep.subr.mxu0 0.0
        %531 = vmatpush2.msra.mxu0 0.0
        %532 = vmatprep.subr.mxu0 0.0
        %533 = vmatpush2.msra.mxu0 0.0
        %534 = vmatprep.subr.mxu0 0.0
        %535 = vmatpush2.msra.mxu0 0.0
        %536 = vmatprep.subr.mxu0 0.0
        %537 = vmatpush2.msra.mxu0 0.0
        %538 = vmatprep.subr.mxu0 0.0
        %539 = vmatpush2.msra.mxu0 0.0
        %540 = vmatprep.subr.mxu0 0.0
        %541 = vmatpush2.msra.mxu0 0.0
        %542 = vmatprep.subr.mxu0 0.0
        %543 = vmatpush2.msra.mxu0 0.0
        %544 = vmatprep.mubr.f32.mxu0 0.0
        %545 = vmatmul.mubr.f32.gmra.mxu0 %v478
        %v546 = vpop.f32.mrf.mxu0
        %v547 = vadd.f32 %v399, %v546
        %v548 = vpop.f32.mrf.mxu0
        %549 = vdwg.mxu0
        %v550 = vmax.f32 %v547, 0.0
        %v552 = vlaneseq
        %v553 = vshrl.u32 %v552, 7
        %v554 = vsub.s32 0, %v553
        %v555 = vrot.slane %v388, %v554
        %v557 = vmul.f32 %v475, %v555
        %v558 = vsel %vm401, %v557, 0.0
        %559 = vadd.xlane.f32.xlu0 %v558
        %v560 = vpop.xlane.xlu0 %559
        %v561 = vstv %s389
        %v562 = vadd.f32 %v560, %v561
        %v563 = vmul.f32 %v550, %v555
        %v564 = vsel %vm401, %v563, 0.0
        %565 = vadd.xlane.f32.xlu0 %v564
        %v566 = vpop.xlane.xlu0 %565
        %v567 = vadd.f32 %v566, %v561
        %v568 = vsub.f32 0.0, %v562
        %v569 = vmax.f32 %v568, 0.0
        %v570 = vand.u32 2147483647, %v568
        %v571 = vsub.f32 0.0, %v570
        %v572 = vmul.f32 %v571, 1.442695
        %v573 = vpow.pop %v572
        %v574 = vadd.f32 %v573, 1.0
        %v575 = vlog2.pop %v574
        %v576 = vmul.f32 %v575, 0.6931472
        %v577 = vadd.f32 %v569, %v576
        %v578 = vmin.f32 %v577, 100.0
        %v579 = vmax.f32 %v567, 0.0
        %v580 = vand.u32 2147483647, %v567
        %v581 = vsub.f32 0.0, %v580
        %v582 = vmul.f32 %v581, 1.442695
        %v583 = vpow.pop %v582
        %v584 = vadd.f32 %v583, 1.0
        %v585 = vlog2.pop %v584
        %v586 = vmul.f32 %v585, 0.6931472
        %v587 = vadd.f32 %v579, %v586
        %v588 = vmin.f32 %v587, 100.0
        %v589 = vld [vmem:[%s376] sm:$0xff]
        %v590 = vmul.f32 %v589, %v578
        %vm591 = vcmask 7168
        %v592 = vsel %vm591, %v590, 0.0
        %593 = vadd.xlane.f32.xlu0 %v592
        %v594 = vpop.xlane.xlu0 %593
        %v595 = vrot.slane %v594, 4
        %v596 = vadd.f32 %v594, %v595
        %v597 = vrot.slane %v596, 2
        %v598 = vadd.f32 %v596, %v597
        %v599 = vrot.slane %v598, 1
        %v600 = vadd.f32 %v598, %v599
        %s601 = vtos %v600
        %v602 = vld [vmem:[%s380] sm:$0xff]
        %v603 = vmul.f32 %v602, %v588
        %v604 = vsel %vm591, %v603, 0.0
        %605 = vadd.xlane.f32.xlu0 %v604
        %v606 = vpop.xlane.xlu0 %605
        %v607 = vrot.slane %v606, 4
        %v608 = vadd.f32 %v606, %v607
        %v609 = vrot.slane %v608, 2
        %v610 = vadd.f32 %v608, %v609
        %v611 = vrot.slane %v610, 1
        %v612 = vadd.f32 %v610, %v611
        %s613 = vtos %v612
        %s614 = sadd.f32 %s601, %s613
        %s615 = sld [smem:[#allocation8]]
        %s616 = sadd.f32 %s615, %s614
        %s617 = scalar_lea.smem [#allocation8], 0
        %618 = sst [smem:[%s617]] %s616
        %p619 = scmp.eq.s32.totalorder %s27, 1
        // Predicated region
        $region65: #{tpu_custom_call.1} parent=51 // pred_check
          %p620 = pneg %p619
        $region66: #{tpu_custom_call.1} parent=51 // pred_check_branch
          %622 = sbr.rel (%p620) target = $region68
        $region67: #{tpu_custom_call.1} parent=51 // pred_region
          %s623 = sld [smem:[#allocation8]]
          %s624 = smul.f32 %s623, 0.03125
          %625 = sst [smem:[%s617]] %s624
        $region68: #{tpu_custom_call.1} parent=51 // pred_fallthru
          _
        // Predicated region
        $region69: #{tpu_custom_call.1} parent=51 // pred_check
          %p626 = pneg %p228
        $region70: #{tpu_custom_call.1} parent=51 // pred_check_branch
          %628 = sbr.rel (%p626) target = $region72
        $region71: #{tpu_custom_call.1} parent=51 // pred_region
          %s630 = ssub.s32 16, 16
          %631 = vsyncadd [#allocation5], %s630
          %634 = dma.smem_to_hbm [#allocation8], 16, %s8, [#allocation5]
        $region72: #{tpu_custom_call.1} parent=51 // pred_fallthru
          _
        // Predicated region
        $region73: #{tpu_custom_call.1} parent=51 // pred_check
          %p635 = pneg %p228
        $region74: #{tpu_custom_call.1} parent=51 // pred_check_branch
          %637 = sbr.rel (%p635) target = $region76
        $region75: #{tpu_custom_call.1} parent=51 // pred_region
          %638 = dma.done [#allocation5], 16
        $region76: #{tpu_custom_call.1} parent=51 // pred_fallthru
          _
        %639 = sfence
      $region52: #{tpu_custom_call.1} parent=5 // pred_fallthru
        _
      %p640 = scmp.le.s32.totalorder 2, %s22
      // Predicated region
      $region77: #{tpu_custom_call.1} parent=5 // pred_check
        %p641 = pneg %p640
      $region78: #{tpu_custom_call.1} parent=5 // pred_check_branch
        %643 = sbr.rel (%p641) target = $region80
      $region79: #{tpu_custom_call.1} parent=5 // pred_region
        %s644 = ssub.s32 %s22, 2
      $region80: #{tpu_custom_call.1} parent=5 // pred_fallthru
        _
    $region6: #{tpu_custom_call.1} parent=1 // loop_footer
      %s26 = sadd.s32 1, %s22
    $region7: #{tpu_custom_call.1} parent=1 // loop_footer_branch
      %21 = sbr.rel target = $region3
    $region8: #{tpu_custom_call.1} parent=1 // loop_exit
      _
    %645 = vsyncpa [#allocation4], 1
    %s646 = scalar_lea.sflag [#allocation4], 1
    %647 = vsyncpa %s646, 1
    %648 = vsyncpa [#allocation7], 1
    %s649 = scalar_lea.sflag [#allocation7], 1
    %650 = vsyncpa %s649, 1
    %651 = vsyncpa [#allocation5], 1
    %s652 = scalar_lea.sflag [#allocation5], 1
    %653 = vsyncpa %s652, 1

</llo_original>
